<compile_context>
chip_gen: v7x
topology: tpu7x:2x2x1
jax: 0.10.0
libtpu: 0.0.40
codegen_flags: <defaults>
</compile_context>

<pallas_src>
import jax
import jax.numpy as jnp
from jax.experimental import pallas as pl
from jax.experimental.pallas import tpu as pltpu

CIFAR_10_MEAN = (0.4914, 0.4822, 0.4465)
CIFAR_10_STD = (0.2470, 0.2435, 0.2616)

NUM_CLASSES = 10
PADDED_CLASSES = 128  # lane-dense output width (multiple of 128)


def _round_up(x, m):
    return (x + m - 1) // m * m


# ---------------------------------------------------------------------------
# Single fused kernel: (TM, D)bf16 @ (D, 128)bf16 -> f32 acc, + (1, 128)f32 bias.
# Normalization is already folded into w_ref / b_ref by prepare_params().
# ---------------------------------------------------------------------------
def fused_linear_kernel(x_ref, w_ref, b_ref, o_ref):
    o_ref[...] = (
        jnp.dot(x_ref[...], w_ref[...], preferred_element_type=jnp.float32)
        + b_ref[...]
    )


def _resident_spec(shape):
    """Constant-index operand: fetched once; single-buffer it to save VMEM."""
    try:
        return pl.BlockSpec(shape, lambda i: (0, 0),
                            pipeline_mode=pl.Buffered(buffer_count=1))
    except Exception:  # older jax without pipeline_mode kwarg
        return pl.BlockSpec(shape, lambda i: (0, 0))


def _choose_tm(N, D, itemsize, vmem_bytes):
    """Generation-aware batch-tile size."""
    budget = vmem_bytes // 3                       # room for weights/out/pipeline
    cap = budget // (2 * D * itemsize)             # double-buffered activation tile
    cap = max(16, min(1024, (cap // 16) * 16))     # bf16 sublane packing -> mult of 16
    tm = min(cap, _round_up(N, 16))
    # Ensure >= 2 grid steps (when the batch allows) so v7x's two TensorCores
    # both get work via the "parallel" dimension; harmless on v5e/v6e.
    while tm > 16 and (_round_up(N, tm) // tm) < 2 and N > 16:
        tm = max(16, (tm // 2) // 16 * 16)
    return tm


def prepare_params(params, C, H, W):
    """One-time fold of normalization into the linear head + lane padding.

    Hoisted out of the per-forward path so inference only runs the kernel.
    Weights are stored bf16 (MXU-native input), bias stays f32.
    """
    mean, std, w, b = params
    D = C * H * W
    # Per-feature scale/shift following NCHW flatten order (channel-major).
    inv_std_feat = jnp.repeat((1.0 / std).astype(jnp.float32), H * W)      # (D,)
    mean_feat = jnp.repeat(mean.astype(jnp.float32), H * W)                # (D,)
    w_fold = (w * inv_std_feat[:, None]).astype(jnp.float32)               # (D, 10)
    b_fold = (b - (mean_feat * inv_std_feat) @ w).astype(jnp.float32)      # (1, 10)

    w_pad = jnp.zeros((D, PADDED_CLASSES), jnp.bfloat16)
    w_pad = w_pad.at[:, :NUM_CLASSES].set(w_fold.astype(jnp.bfloat16))
    b_pad = jnp.zeros((1, PADDED_CLASSES), jnp.float32)
    b_pad = b_pad.at[:, :NUM_CLASSES].set(b_fold)
    return w_pad, b_pad


def normalized_cifar10_forward(x, w_pad, b_pad):
    """x: (N, 3, H, W) float.  Returns (N, NUM_CLASSES) float32 logits."""
    N = x.shape[0]
    D = w_pad.shape[0]

    try:
        vmem_bytes = int(pltpu.get_tpu_info().vmem_capacity_bytes)
    except Exception:
        vmem_bytes = 64 << 20  # conservative fallback (v7x per-TC VMEM)

    # Stream activations in bf16 (halves HBM bytes); accumulate f32 in-kernel.
    x_flat = x.reshape(N, D).astype(jnp.bfloat16)
    TM = _choose_tm(N, D, 2, vmem_bytes)
    N_pad = _round_up(N, TM)
    if N_pad != N:
        x_flat = jnp.pad(x_flat, ((0, N_pad - N), (0, 0)))

    cost = pl.CostEstimate(
        flops=2 * N_pad * D * PADDED_CLASSES,
        transcendentals=0,
        bytes_accessed=(N_pad * D * 2                  # bf16 activations
                        + D * PADDED_CLASSES * 2       # bf16 weights (once)
                        + PADDED_CLASSES * 4           # f32 bias
                        + N_pad * PADDED_CLASSES * 4), # f32 output
    )

    vmem_limit = int(min(vmem_bytes * 3 // 4, 100 << 20))

    out = pl.pallas_call(
        fused_linear_kernel,
        out_shape=jax.ShapeDtypeStruct((N_pad, PADDED_CLASSES), jnp.float32),
        grid=(N_pad // TM,),
        in_specs=[
            pl.BlockSpec((TM, D), lambda i: (i, 0)),        # streamed batch tile
            _resident_spec((D, PADDED_CLASSES)),            # resident weights
            _resident_spec((1, PADDED_CLASSES)),            # resident bias
        ],
        out_specs=pl.BlockSpec((TM, PADDED_CLASSES), lambda i: (i, 0)),
        compiler_params=pltpu.CompilerParams(
            dimension_semantics=("parallel",),
            vmem_limit_bytes=vmem_limit),
        cost_estimate=cost,
    )(x_flat, w_pad, b_pad)

    return out[:N, :NUM_CLASSES]


def init_params(key, C, H, W):
    k_w, k_b = jax.random.split(key)
    D = C * H * W
    mean = jnp.asarray(CIFAR_10_MEAN, dtype=jnp.float32)
    std = jnp.asarray(CIFAR_10_STD, dtype=jnp.float32)
    w = jax.random.normal(k_w, (D, NUM_CLASSES), dtype=jnp.float32) * 0.02
    b = jax.random.normal(k_b, (1, NUM_CLASSES), dtype=jnp.float32) * 0.01
    return mean, std, w, b


if __name__ == "__main__":
    key = jax.random.PRNGKey(0)
    k_x, k_p = jax.random.split(key)

    N, C, H, W = 2, 3, 16, 16                   # small CIFAR-like input
    x = jax.random.uniform(k_x, (N, C, H, W), dtype=jnp.float32)

    params = init_params(k_p, C, H, W)
    # One-time: fold normalization into the head and pad to 128 lanes.
    w_pad, b_pad = prepare_params(params, C, H, W)

    fwd = jax.jit(normalized_cifar10_forward)
    out = jax.block_until_ready(fwd(x, w_pad, b_pad))

    # Reference in plain JAX / f32 (same semantics as the PyTorch module:
    # normalize then base model = linear head).
    mean, std, w, b = params
    x_norm_ref = (x - mean.reshape(1, 3, 1, 1)) / std.reshape(1, 3, 1, 1)
    ref = x_norm_ref.reshape(N, -1) @ w + b
    assert out.shape == (N, NUM_CLASSES)
    # bf16-streamed activations/weights with f32 accumulation -> looser tol.
    assert jnp.allclose(out, ref, atol=2e-2, rtol=2e-2), float(
        jnp.max(jnp.abs(out - ref)))

    print("KERNEL_OK")
</pallas_src>

<mosaic_0001>
module attributes {stable_mosaic.version = 11 : i64} {
  func.func @fused_linear_kernel(%arg0: i32, %arg1: memref<16x768xbf16, #tpu.memory_space<vmem>>, %arg2: memref<768x128xbf16, #tpu.memory_space<vmem>>, %arg3: memref<1x128xf32, #tpu.memory_space<vmem>>, %arg4: memref<16x128xf32, #tpu.memory_space<vmem>>) attributes {dimension_semantics = [#tpu.dimension_semantics<parallel>], iteration_bounds = array<i64: 1>, scalar_prefetch = 0 : i64, scratch_operands = 0 : i64, tpu.core_type = #tpu.core_type<tc>, window_params = [{transform_indices = @transform_0, window_bounds = array<i64: 16, 768>}, {pipeline_mode = #tpu.pipeline_mode<synchronous>, transform_indices = @transform_1, window_bounds = array<i64: 768, 128>}, {pipeline_mode = #tpu.pipeline_mode<synchronous>, transform_indices = @transform_2, window_bounds = array<i64: 1, 128>}, {transform_indices = @transform_3, window_bounds = array<i64: 16, 128>}]} {
    %c0 = arith.constant 0 : index
    %c0_0 = arith.constant 0 : index
    %0 = vector.load %arg1[%c0, %c0_0] : memref<16x768xbf16, #tpu.memory_space<vmem>>, vector<16x768xbf16>
    %c0_1 = arith.constant 0 : index
    %c0_2 = arith.constant 0 : index
    %1 = vector.load %arg2[%c0_1, %c0_2] : memref<768x128xbf16, #tpu.memory_space<vmem>>, vector<768x128xbf16>
    %cst = arith.constant dense<0.000000e+00> : vector<16x128xf32>
    %2 = tpu.matmul %0, %1, %cst {dimension_numbers = #tpu.dot_dimension_numbers<[1], [0], [0], [1], [0, 0, 1, 1], [], []>} : vector<16x768xbf16>, vector<768x128xbf16>, vector<16x128xf32> -> vector<16x128xf32>
    %c0_3 = arith.constant 0 : index
    %c0_4 = arith.constant 0 : index
    %3 = vector.load %arg3[%c0_3, %c0_4] : memref<1x128xf32, #tpu.memory_space<vmem>>, vector<1x128xf32>
    %4 = vector.broadcast %3 : vector<1x128xf32> to vector<16x128xf32>
    %5 = arith.addf %2, %4 : vector<16x128xf32>
    %c0_5 = arith.constant 0 : index
    %c0_6 = arith.constant 0 : index
    %6 = vector.load %arg4[%c0_5, %c0_6] : memref<16x128xf32, #tpu.memory_space<vmem>>, vector<16x128xf32>
    tpu.vector_store %arg4[%c0_5, %c0_6], %5 {strides = array<i32>} : memref<16x128xf32, #tpu.memory_space<vmem>>, vector<16x128xf32>,
    return
  }
  func.func @transform_0(%arg0: i32) -> (i32, i32) {
    %c0_i32 = arith.constant 0 : i32
    %c0_i32_0 = arith.constant 0 : i32
    return %arg0, %c0_i32 : i32, i32
  }
  func.func @transform_1(%arg0: i32) -> (i32, i32) {
    %c0_i32 = arith.constant 0 : i32
    %c0_i32_0 = arith.constant 0 : i32
    %c0_i32_1 = arith.constant 0 : i32
    return %c0_i32, %c0_i32_0 : i32, i32
  }
  func.func @transform_2(%arg0: i32) -> (i32, i32) {
    %c0_i32 = arith.constant 0 : i32
    %c0_i32_0 = arith.constant 0 : i32
    %c0_i32_1 = arith.constant 0 : i32
    return %c0_i32, %c0_i32_0 : i32, i32
  }
  func.func @transform_3(%arg0: i32) -> (i32, i32) {
    %c0_i32 = arith.constant 0 : i32
    %c0_i32_0 = arith.constant 0 : i32
    return %arg0, %c0_i32 : i32, i32
  }
}

</mosaic_0001>

<llo_original>
// kernel: normalized_cifar10_forward.1
$region0: #{normalized_cifar10_forward.1}
  #allocation0 [shape = 'u32[]', space=smem, size = 0x4, offset = 0x4, fixed_abs, tag = 'smem constant byte address 0x4 - core index']
  #allocation1 [shape = 'u32[144,128]{1,0:T(1,128)}', space=vmem, size = 0x12000, scoped, tag = 'internal scratch']
  %s0 = inlined_call_operand.vmem [shape: bf16[16,768], index: 0, kind: input, shape index: {}]
  %s1 = inlined_call_operand.hbm [shape: bf16[768,128], index: 1, kind: input, shape index: {}]
  %s2 = inlined_call_operand.vmem [shape: f32[1,128], index: 2, kind: input, shape index: {}]
  %s3 = inlined_call_operand.vmem [shape: f32[16,128], index: 3, kind: output, shape index: {}]
  %s4 = sld [smem:[#allocation0]]
  $region26: #{normalized_cifar10_forward.1} parent=0
    _
  %s6 = ssub.s32 1, %s4
  %s7 = scalar_select 0, %s6, %s4
  $region1: #{normalized_cifar10_forward.1} parent=0
    #allocation2 [shape = 'u8[196608]{0}', space=vmem, size = 0x30000, scoped, tag = 'input window, operand 1, single buffered']
    #allocation3 [shape = 's32[1]{0}', space=sflag, size = 0x4, scoped, tag = 'scoped memory for normalized_cifar10_forward.1']
    %8 = vsyncpa [#allocation3], 0
    // Predicated region
    $region2: #{normalized_cifar10_forward.1} parent=1 // pred_check
      _
    $region3: #{normalized_cifar10_forward.1} parent=1 // pred_check_branch
      %10 = sbr.rel (0) target = $region5
    $region4: #{normalized_cifar10_forward.1} parent=1 // pred_region
      _
    $region5: #{normalized_cifar10_forward.1} parent=1 // pred_fallthru
      _
    // Predicated region
    $region6: #{normalized_cifar10_forward.1} parent=1 // pred_check
      _
    $region7: #{normalized_cifar10_forward.1} parent=1 // pred_check_branch
      %12 = sbr.rel (0) target = $region9
    $region8: #{normalized_cifar10_forward.1} parent=1 // pred_region
      %s14 = ssub.s32 6144, 6144
      %15 = vsyncadd [#allocation3], %s14
      %s16 = sshll.u32 [#allocation2], 4
      %s17 = int_to_ptr.vmem [resolvable:$true] %s16
      %22 = dma.hbm_to_vmem [thread:$0]  %s1, 6144, %s17, [#allocation3], 64, 64, 4
    $region9: #{normalized_cifar10_forward.1} parent=1 // pred_fallthru
      _
    // Predicated region
    $region10: #{normalized_cifar10_forward.1} parent=1 // pred_check
      _
    $region11: #{normalized_cifar10_forward.1} parent=1 // pred_check_branch
      %24 = sbr.rel (0) target = $region13
    $region12: #{normalized_cifar10_forward.1} parent=1 // pred_region
      _
    $region13: #{normalized_cifar10_forward.1} parent=1 // pred_fallthru
      _
    // Predicated region
    $region14: #{normalized_cifar10_forward.1} parent=1 // pred_check
      _
    $region15: #{normalized_cifar10_forward.1} parent=1 // pred_check_branch
      %26 = sbr.rel (0) target = $region17
    $region16: #{normalized_cifar10_forward.1} parent=1 // pred_region
      %27 = dma.done [#allocation3], 6144
    $region17: #{normalized_cifar10_forward.1} parent=1 // pred_fallthru
      _
    %v29 = vld [vmem:[%s0] sm:$0xff]
    %v30 = vld [vmem:[%s0 + $0x8] sm:$0xff]
    %v31 = vld [vmem:[%s0 + $0x10] sm:$0xff]
    %v32 = vld [vmem:[%s0 + $0x18] sm:$0xff]
    %v33 = vld [vmem:[%s0 + $0x20] sm:$0xff]
    %v34 = vld [vmem:[%s0 + $0x28] sm:$0xff]
    %v35 = vld [vmem:[#allocation2] sm:$0xf]
    %v36 = vld [vmem:[#allocation2 + $0x4] sm:$0xf]
    %v37 = vld [vmem:[#allocation2 + $0x8] sm:$0xf]
    %v38 = vld [vmem:[#allocation2 + $0xc] sm:$0xf]
    %v39 = vld [vmem:[#allocation2 + $0x10] sm:$0xf]
    %v40 = vld [vmem:[#allocation2 + $0x14] sm:$0xf]
    %v41 = vld [vmem:[#allocation2 + $0x18] sm:$0xf]
    %v42 = vld [vmem:[#allocation2 + $0x1c] sm:$0xf]
    %v43 = vld [vmem:[#allocation2 + $0x20] sm:$0xf]
    %v44 = vld [vmem:[#allocation2 + $0x24] sm:$0xf]
    %v45 = vld [vmem:[#allocation2 + $0x28] sm:$0xf]
    %v46 = vld [vmem:[#allocation2 + $0x2c] sm:$0xf]
    %v47 = vld [vmem:[#allocation2 + $0x30] sm:$0xf]
    %v48 = vld [vmem:[#allocation2 + $0x34] sm:$0xf]
    %v49 = vld [vmem:[#allocation2 + $0x38] sm:$0xf]
    %v50 = vld [vmem:[#allocation2 + $0x3c] sm:$0xf]
    %v51 = vld [vmem:[#allocation2 + $0x40] sm:$0xf]
    %v52 = vld [vmem:[#allocation2 + $0x44] sm:$0xf]
    %v53 = vld [vmem:[#allocation2 + $0x48] sm:$0xf]
    %v54 = vld [vmem:[#allocation2 + $0x4c] sm:$0xf]
    %v55 = vld [vmem:[#allocation2 + $0x50] sm:$0xf]
    %v56 = vld [vmem:[#allocation2 + $0x54] sm:$0xf]
    %v57 = vld [vmem:[#allocation2 + $0x58] sm:$0xf]
    %v58 = vld [vmem:[#allocation2 + $0x5c] sm:$0xf]
    %v59 = vld [vmem:[#allocation2 + $0x60] sm:$0xf]
    %v60 = vld [vmem:[#allocation2 + $0x64] sm:$0xf]
    %v61 = vld [vmem:[#allocation2 + $0x68] sm:$0xf]
    %v62 = vld [vmem:[#allocation2 + $0x6c] sm:$0xf]
    %v63 = vld [vmem:[#allocation2 + $0x70] sm:$0xf]
    %v64 = vld [vmem:[#allocation2 + $0x74] sm:$0xf]
    %v65 = vld [vmem:[#allocation2 + $0x78] sm:$0xf]
    %v66 = vld [vmem:[#allocation2 + $0x7c] sm:$0xf]
    %v67 = vld [vmem:[#allocation2 + $0x80] sm:$0xf]
    %v68 = vld [vmem:[#allocation2 + $0x84] sm:$0xf]
    %v69 = vld [vmem:[#allocation2 + $0x88] sm:$0xf]
    %v70 = vld [vmem:[#allocation2 + $0x8c] sm:$0xf]
    %v71 = vld [vmem:[#allocation2 + $0x90] sm:$0xf]
    %v72 = vld [vmem:[#allocation2 + $0x94] sm:$0xf]
    %v73 = vld [vmem:[#allocation2 + $0x98] sm:$0xf]
    %v74 = vld [vmem:[#allocation2 + $0x9c] sm:$0xf]
    %v75 = vld [vmem:[#allocation2 + $0xa0] sm:$0xf]
    %v76 = vld [vmem:[#allocation2 + $0xa4] sm:$0xf]
    %v77 = vld [vmem:[#allocation2 + $0xa8] sm:$0xf]
    %v78 = vld [vmem:[#allocation2 + $0xac] sm:$0xf]
    %v79 = vld [vmem:[#allocation2 + $0xb0] sm:$0xf]
    %v80 = vld [vmem:[#allocation2 + $0xb4] sm:$0xf]
    %v81 = vld [vmem:[#allocation2 + $0xb8] sm:$0xf]
    %v82 = vld [vmem:[#allocation2 + $0xbc] sm:$0xf]
    %v83 = vld [vmem:[#allocation2 + $0xc0] sm:$0xf]
    %v84 = vld [vmem:[#allocation2 + $0xc4] sm:$0xf]
    %v85 = vld [vmem:[#allocation2 + $0xc8] sm:$0xf]
    %v86 = vld [vmem:[#allocation2 + $0xcc] sm:$0xf]
    %v87 = vld [vmem:[#allocation2 + $0xd0] sm:$0xf]
    %v88 = vld [vmem:[#allocation2 + $0xd4] sm:$0xf]
    %v89 = vld [vmem:[#allocation2 + $0xd8] sm:$0xf]
    %v90 = vld [vmem:[#allocation2 + $0xdc] sm:$0xf]
    %v91 = vld [vmem:[#allocation2 + $0xe0] sm:$0xf]
    %v92 = vld [vmem:[#allocation2 + $0xe4] sm:$0xf]
    %v93 = vld [vmem:[#allocation2 + $0xe8] sm:$0xf]
    %v94 = vld [vmem:[#allocation2 + $0xec] sm:$0xf]
    %v95 = vld [vmem:[#allocation2 + $0xf0] sm:$0xf]
    %v96 = vld [vmem:[#allocation2 + $0xf4] sm:$0xf]
    %v97 = vld [vmem:[#allocation2 + $0xf8] sm:$0xf]
    %v98 = vld [vmem:[#allocation2 + $0xfc] sm:$0xf]
    %v99 = vld [vmem:[#allocation2 + $0x100] sm:$0xf]
    %v100 = vld [vmem:[#allocation2 + $0x104] sm:$0xf]
    %v101 = vld [vmem:[#allocation2 + $0x108] sm:$0xf]
    %v102 = vld [vmem:[#allocation2 + $0x10c] sm:$0xf]
    %v103 = vld [vmem:[#allocation2 + $0x110] sm:$0xf]
    %v104 = vld [vmem:[#allocation2 + $0x114] sm:$0xf]
    %v105 = vld [vmem:[#allocation2 + $0x118] sm:$0xf]
    %v106 = vld [vmem:[#allocation2 + $0x11c] sm:$0xf]
    %v107 = vld [vmem:[#allocation2 + $0x120] sm:$0xf]
    %v108 = vld [vmem:[#allocation2 + $0x124] sm:$0xf]
    %v109 = vld [vmem:[#allocation2 + $0x128] sm:$0xf]
    %v110 = vld [vmem:[#allocation2 + $0x12c] sm:$0xf]
    %v111 = vld [vmem:[#allocation2 + $0x130] sm:$0xf]
    %v112 = vld [vmem:[#allocation2 + $0x134] sm:$0xf]
    %v113 = vld [vmem:[#allocation2 + $0x138] sm:$0xf]
    %v114 = vld [vmem:[#allocation2 + $0x13c] sm:$0xf]
    %v115 = vld [vmem:[#allocation2 + $0x140] sm:$0xf]
    %v116 = vld [vmem:[#allocation2 + $0x144] sm:$0xf]
    %v117 = vld [vmem:[#allocation2 + $0x148] sm:$0xf]
    %v118 = vld [vmem:[#allocation2 + $0x14c] sm:$0xf]
    %v119 = vld [vmem:[#allocation2 + $0x150] sm:$0xf]
    %v120 = vld [vmem:[#allocation2 + $0x154] sm:$0xf]
    %v121 = vld [vmem:[#allocation2 + $0x158] sm:$0xf]
    %v122 = vld [vmem:[#allocation2 + $0x15c] sm:$0xf]
    %v123 = vld [vmem:[#allocation2 + $0x160] sm:$0xf]
    %v124 = vld [vmem:[#allocation2 + $0x164] sm:$0xf]
    %v125 = vld [vmem:[#allocation2 + $0x168] sm:$0xf]
    %v126 = vld [vmem:[#allocation2 + $0x16c] sm:$0xf]
    %v127 = vld [vmem:[#allocation2 + $0x170] sm:$0xf]
    %v128 = vld [vmem:[#allocation2 + $0x174] sm:$0xf]
    %v129 = vld [vmem:[#allocation2 + $0x178] sm:$0xf]
    %v130 = vld [vmem:[#allocation2 + $0x17c] sm:$0xf]
    %v131 = vld [vmem:[%s2] sm:$0x1]
    %v133 = vlaneseq
    %v134 = vshrl.u32 %v133, 7
    %v135 = vsub.s32 0, %v134
    %v136 = vrot.slane %v131, %v135
    %v144 = vunpack.c.l.b16 %v29
    %v145 = vunpack.c.h.b16 %v29
    %v146 = vunpack.c.l.b16 %v30
    %v147 = vunpack.c.h.b16 %v30
    %v148 = vunpack.c.l.b16 %v31
    %v149 = vunpack.c.h.b16 %v31
    %v150 = vunpack.c.l.b16 %v32
    %v151 = vunpack.c.h.b16 %v32
    %v152 = vunpack.c.l.b16 %v33
    %v153 = vunpack.c.h.b16 %v33
    %v154 = vunpack.c.l.b16 %v34
    %v155 = vunpack.c.h.b16 %v34
    %v156 = vpack.c.b16 %v150, %v144
    %v157 = vpack.c.b16 %v151, %v145
    %v158 = vpack.c.b16 %v152, %v146
    %v159 = vpack.c.b16 %v153, %v147
    %v160 = vpack.c.b16 %v154, %v148
    %v161 = vpack.c.b16 %v155, %v149
    %v264 = vunpack.c.l.b16 %v35
    %v265 = vunpack.c.l.b16 %v36
    %v266 = vunpack.c.l.b16 %v37
    %v267 = vunpack.c.l.b16 %v38
    %v268 = vunpack.c.l.b16 %v39
    %v269 = vunpack.c.l.b16 %v40
    %v270 = vunpack.c.l.b16 %v41
    %v271 = vunpack.c.l.b16 %v42
    %v272 = vunpack.c.l.b16 %v43
    %v273 = vunpack.c.l.b16 %v44
    %v274 = vunpack.c.l.b16 %v45
    %v275 = vunpack.c.l.b16 %v46
    %v276 = vunpack.c.l.b16 %v47
    %v277 = vunpack.c.l.b16 %v48
    %v278 = vunpack.c.l.b16 %v49
    %v279 = vunpack.c.l.b16 %v50
    %v280 = vunpack.c.l.b16 %v51
    %v281 = vunpack.c.l.b16 %v52
    %v282 = vunpack.c.l.b16 %v53
    %v283 = vunpack.c.l.b16 %v54
    %v284 = vunpack.c.l.b16 %v55
    %v285 = vunpack.c.l.b16 %v56
    %v286 = vunpack.c.l.b16 %v57
    %v287 = vunpack.c.l.b16 %v58
    %v288 = vunpack.c.l.b16 %v59
    %v289 = vunpack.c.l.b16 %v60
    %v290 = vunpack.c.l.b16 %v61
    %v291 = vunpack.c.l.b16 %v62
    %v292 = vunpack.c.l.b16 %v63
    %v293 = vunpack.c.l.b16 %v64
    %v294 = vunpack.c.l.b16 %v65
    %v295 = vunpack.c.l.b16 %v66
    %v296 = vunpack.c.l.b16 %v67
    %v297 = vunpack.c.l.b16 %v68
    %v298 = vunpack.c.l.b16 %v69
    %v299 = vunpack.c.l.b16 %v70
    %v300 = vunpack.c.l.b16 %v71
    %v301 = vunpack.c.l.b16 %v72
    %v302 = vunpack.c.l.b16 %v73
    %v303 = vunpack.c.l.b16 %v74
    %v304 = vunpack.c.l.b16 %v75
    %v305 = vunpack.c.l.b16 %v76
    %v306 = vunpack.c.l.b16 %v77
    %v307 = vunpack.c.l.b16 %v78
    %v308 = vunpack.c.l.b16 %v79
    %v309 = vunpack.c.l.b16 %v80
    %v310 = vunpack.c.l.b16 %v81
    %v311 = vunpack.c.l.b16 %v82
    %v312 = vunpack.c.l.b16 %v83
    %v313 = vunpack.c.l.b16 %v84
    %v314 = vunpack.c.l.b16 %v85
    %v315 = vunpack.c.l.b16 %v86
    %v316 = vunpack.c.l.b16 %v87
    %v317 = vunpack.c.l.b16 %v88
    %v318 = vunpack.c.l.b16 %v89
    %v319 = vunpack.c.l.b16 %v90
    %v320 = vunpack.c.l.b16 %v91
    %v321 = vunpack.c.l.b16 %v92
    %v322 = vunpack.c.l.b16 %v93
    %v323 = vunpack.c.l.b16 %v94
    %v324 = vunpack.c.l.b16 %v95
    %v325 = vunpack.c.l.b16 %v96
    %v326 = vunpack.c.l.b16 %v97
    %v327 = vunpack.c.l.b16 %v98
    %v328 = vunpack.c.l.b16 %v99
    %v329 = vunpack.c.l.b16 %v100
    %v330 = vunpack.c.l.b16 %v101
    %v331 = vunpack.c.l.b16 %v102
    %v332 = vunpack.c.l.b16 %v103
    %v333 = vunpack.c.l.b16 %v104
    %v334 = vunpack.c.l.b16 %v105
    %v335 = vunpack.c.l.b16 %v106
    %v336 = vunpack.c.l.b16 %v107
    %v337 = vunpack.c.l.b16 %v108
    %v338 = vunpack.c.l.b16 %v109
    %v339 = vunpack.c.l.b16 %v110
    %v340 = vunpack.c.l.b16 %v111
    %v341 = vunpack.c.l.b16 %v112
    %v342 = vunpack.c.l.b16 %v113
    %v343 = vunpack.c.l.b16 %v114
    %v344 = vunpack.c.l.b16 %v115
    %v345 = vunpack.c.l.b16 %v116
    %v346 = vunpack.c.l.b16 %v117
    %v347 = vunpack.c.l.b16 %v118
    %v348 = vunpack.c.l.b16 %v119
    %v349 = vunpack.c.l.b16 %v120
    %v350 = vunpack.c.l.b16 %v121
    %v351 = vunpack.c.l.b16 %v122
    %v352 = vunpack.c.l.b16 %v123
    %v353 = vunpack.c.l.b16 %v124
    %v354 = vunpack.c.l.b16 %v125
    %v355 = vunpack.c.l.b16 %v126
    %v356 = vunpack.c.l.b16 %v127
    %v357 = vunpack.c.l.b16 %v128
    %v358 = vunpack.c.l.b16 %v129
    %v359 = vunpack.c.l.b16 %v130
    %v360 = vpack.c.b16 %v265, %v264
    %v361 = vpack.c.b16 %v267, %v266
    %v362 = vpack.c.b16 %v269, %v268
    %v363 = vpack.c.b16 %v271, %v270
    %v364 = vpack.c.b16 %v273, %v272
    %v365 = vpack.c.b16 %v275, %v274
    %v366 = vpack.c.b16 %v277, %v276
    %v367 = vpack.c.b16 %v279, %v278
    %v368 = vpack.c.b16 %v281, %v280
    %v369 = vpack.c.b16 %v283, %v282
    %v370 = vpack.c.b16 %v285, %v284
    %v371 = vpack.c.b16 %v287, %v286
    %v372 = vpack.c.b16 %v289, %v288
    %v373 = vpack.c.b16 %v291, %v290
    %v374 = vpack.c.b16 %v293, %v292
    %v375 = vpack.c.b16 %v295, %v294
    %v376 = vpack.c.b16 %v297, %v296
    %v377 = vpack.c.b16 %v299, %v298
    %v378 = vpack.c.b16 %v301, %v300
    %v379 = vpack.c.b16 %v303, %v302
    %v380 = vpack.c.b16 %v305, %v304
    %v381 = vpack.c.b16 %v307, %v306
    %v382 = vpack.c.b16 %v309, %v308
    %v383 = vpack.c.b16 %v311, %v310
    %v384 = vpack.c.b16 %v313, %v312
    %v385 = vpack.c.b16 %v315, %v314
    %v386 = vpack.c.b16 %v317, %v316
    %v387 = vpack.c.b16 %v319, %v318
    %v388 = vpack.c.b16 %v321, %v320
    %v389 = vpack.c.b16 %v323, %v322
    %v390 = vpack.c.b16 %v325, %v324
    %v391 = vpack.c.b16 %v327, %v326
    %v392 = vpack.c.b16 %v329, %v328
    %v393 = vpack.c.b16 %v331, %v330
    %v394 = vpack.c.b16 %v333, %v332
    %v395 = vpack.c.b16 %v335, %v334
    %v396 = vpack.c.b16 %v337, %v336
    %v397 = vpack.c.b16 %v339, %v338
    %v398 = vpack.c.b16 %v341, %v340
    %v399 = vpack.c.b16 %v343, %v342
    %v400 = vpack.c.b16 %v345, %v344
    %v401 = vpack.c.b16 %v347, %v346
    %v402 = vpack.c.b16 %v349, %v348
    %v403 = vpack.c.b16 %v351, %v350
    %v404 = vpack.c.b16 %v353, %v352
    %v405 = vpack.c.b16 %v355, %v354
    %v406 = vpack.c.b16 %v357, %v356
    %v407 = vpack.c.b16 %v359, %v358
    %456 = vmatprep.subr.bf16.mxu0 0
    %457 = vmatpush1.bf16.msra.mxu0 %v360
    %458 = vmatprep.subr.bf16.mxu0 0
    %459 = vmatpush1.bf16.msra.mxu0 %v361
    %460 = vmatprep.subr.bf16.mxu0 0
    %461 = vmatpush1.bf16.msra.mxu0 %v362
    %462 = vmatprep.subr.bf16.mxu0 0
    %463 = vmatpush1.bf16.msra.mxu0 %v363
    %464 = vmatprep.subr.bf16.mxu0 0
    %465 = vmatpush1.bf16.msra.mxu0 %v364
    %466 = vmatprep.subr.bf16.mxu0 0
    %467 = vmatpush1.bf16.msra.mxu0 %v365
    %468 = vmatprep.subr.bf16.mxu0 0
    %469 = vmatpush1.bf16.msra.mxu0 %v366
    %470 = vmatprep.subr.bf16.mxu0 0
    %471 = vmatpush1.bf16.msra.mxu0 %v367
    %472 = vmatprep.subr.bf16.mxu0 0
    %473 = vmatpush1.bf16.msra.mxu0 %v368
    %474 = vmatprep.subr.bf16.mxu0 0
    %475 = vmatpush1.bf16.msra.mxu0 %v369
    %476 = vmatprep.subr.bf16.mxu0 0
    %477 = vmatpush1.bf16.msra.mxu0 %v370
    %478 = vmatprep.subr.bf16.mxu0 0
    %479 = vmatpush1.bf16.msra.mxu0 %v371
    %480 = vmatprep.subr.bf16.mxu0 0
    %481 = vmatpush1.bf16.msra.mxu0 %v372
    %482 = vmatprep.subr.bf16.mxu0 0
    %483 = vmatpush1.bf16.msra.mxu0 %v373
    %484 = vmatprep.subr.bf16.mxu0 0
    %485 = vmatpush1.bf16.msra.mxu0 %v374
    %486 = vmatprep.subr.bf16.mxu0 0
    %487 = vmatpush1.bf16.msra.mxu0 %v375
    %488 = vmatprep.mubr.bf16.mxu0 %v157
    %489 = vmatmul.mubr.bf16.gmra.mrb[0].mxu0 %v156
    %v490 = vpop.f32.mrb[0].mxu0
    %v491 = vadd.f32 %v136, %v490
    %v492 = vpop.f32.mrb[0].mxu0
    %v493 = vpop.f32.mrb[0].mxu0
    %v494 = vadd.f32 %v136, %v493
    %v495 = vpop.f32.mrb[0].mxu0
    %496 = vdwg.mxu0
    %497 = vmatprep.subr.bf16.mxu0 0
    %498 = vmatpush1.bf16.msra.mxu0 %v376
    %499 = vmatprep.subr.bf16.mxu0 0
    %500 = vmatpush1.bf16.msra.mxu0 %v377
    %501 = vmatprep.subr.bf16.mxu0 0
    %502 = vmatpush1.bf16.msra.mxu0 %v378
    %503 = vmatprep.subr.bf16.mxu0 0
    %504 = vmatpush1.bf16.msra.mxu0 %v379
    %505 = vmatprep.subr.bf16.mxu0 0
    %506 = vmatpush1.bf16.msra.mxu0 %v380
    %507 = vmatprep.subr.bf16.mxu0 0
    %508 = vmatpush1.bf16.msra.mxu0 %v381
    %509 = vmatprep.subr.bf16.mxu0 0
    %510 = vmatpush1.bf16.msra.mxu0 %v382
    %511 = vmatprep.subr.bf16.mxu0 0
    %512 = vmatpush1.bf16.msra.mxu0 %v383
    %513 = vmatprep.subr.bf16.mxu0 0
    %514 = vmatpush1.bf16.msra.mxu0 %v384
    %515 = vmatprep.subr.bf16.mxu0 0
    %516 = vmatpush1.bf16.msra.mxu0 %v385
    %517 = vmatprep.subr.bf16.mxu0 0
    %518 = vmatpush1.bf16.msra.mxu0 %v386
    %519 = vmatprep.subr.bf16.mxu0 0
    %520 = vmatpush1.bf16.msra.mxu0 %v387
    %521 = vmatprep.subr.bf16.mxu0 0
    %522 = vmatpush1.bf16.msra.mxu0 %v388
    %523 = vmatprep.subr.bf16.mxu0 0
    %524 = vmatpush1.bf16.msra.mxu0 %v389
    %525 = vmatprep.subr.bf16.mxu0 0
    %526 = vmatpush1.bf16.msra.mxu0 %v390
    %527 = vmatprep.subr.bf16.mxu0 0
    %528 = vmatpush1.bf16.msra.mxu0 %v391
    %529 = vmatprep.mubr.bf16.mxu0 %v159
    %530 = vmatmul.mubr.bf16.gmra.mrb[0].mxu0 %v158
    %v531 = vpop.f32.mrb[0].mxu0
    %v532 = vadd.f32 %v491, %v531
    %v533 = vpop.f32.mrb[0].mxu0
    %v534 = vpop.f32.mrb[0].mxu0
    %v535 = vadd.f32 %v494, %v534
    %v536 = vpop.f32.mrb[0].mxu0
    %537 = vdwg.mxu0
    %538 = vmatprep.subr.bf16.mxu0 0
    %539 = vmatpush1.bf16.msra.mxu0 %v392
    %540 = vmatprep.subr.bf16.mxu0 0
    %541 = vmatpush1.bf16.msra.mxu0 %v393
    %542 = vmatprep.subr.bf16.mxu0 0
    %543 = vmatpush1.bf16.msra.mxu0 %v394
    %544 = vmatprep.subr.bf16.mxu0 0
    %545 = vmatpush1.bf16.msra.mxu0 %v395
    %546 = vmatprep.subr.bf16.mxu0 0
    %547 = vmatpush1.bf16.msra.mxu0 %v396
    %548 = vmatprep.subr.bf16.mxu0 0
    %549 = vmatpush1.bf16.msra.mxu0 %v397
    %550 = vmatprep.subr.bf16.mxu0 0
    %551 = vmatpush1.bf16.msra.mxu0 %v398
    %552 = vmatprep.subr.bf16.mxu0 0
    %553 = vmatpush1.bf16.msra.mxu0 %v399
    %554 = vmatprep.subr.bf16.mxu0 0
    %555 = vmatpush1.bf16.msra.mxu0 %v400
    %556 = vmatprep.subr.bf16.mxu0 0
    %557 = vmatpush1.bf16.msra.mxu0 %v401
    %558 = vmatprep.subr.bf16.mxu0 0
    %559 = vmatpush1.bf16.msra.mxu0 %v402
    %560 = vmatprep.subr.bf16.mxu0 0
    %561 = vmatpush1.bf16.msra.mxu0 %v403
    %562 = vmatprep.subr.bf16.mxu0 0
    %563 = vmatpush1.bf16.msra.mxu0 %v404
    %564 = vmatprep.subr.bf16.mxu0 0
    %565 = vmatpush1.bf16.msra.mxu0 %v405
    %566 = vmatprep.subr.bf16.mxu0 0
    %567 = vmatpush1.bf16.msra.mxu0 %v406
    %568 = vmatprep.subr.bf16.mxu0 0
    %569 = vmatpush1.bf16.msra.mxu0 %v407
    %570 = vmatprep.mubr.bf16.mxu0 %v161
    %571 = vmatmul.mubr.bf16.gmra.mrb[0].mxu0 %v160
    %v572 = vpop.f32.mrb[0].mxu0
    %v573 = vadd.f32 %v532, %v572
    %v574 = vpop.f32.mrb[0].mxu0
    %v575 = vpop.f32.mrb[0].mxu0
    %v576 = vadd.f32 %v535, %v575
    %v577 = vpop.f32.mrb[0].mxu0
    %578 = vdwg.mxu0
    %579 = vst [vmem:[%s3] sm:$0xff] %v573
    %580 = vst [vmem:[%s3 + $0x8] sm:$0xff] %v576
    // Predicated region
    $region18: #{normalized_cifar10_forward.1} parent=1 // pred_check
      _
    $region19: #{normalized_cifar10_forward.1} parent=1 // pred_check_branch
      %582 = sbr.rel (0) target = $region21
    $region20: #{normalized_cifar10_forward.1} parent=1 // pred_region
      _
    $region21: #{normalized_cifar10_forward.1} parent=1 // pred_fallthru
      _
    // Predicated region
    $region22: #{normalized_cifar10_forward.1} parent=1 // pred_check
      _
    $region23: #{normalized_cifar10_forward.1} parent=1 // pred_check_branch
      %584 = sbr.rel (0) target = $region25
    $region24: #{normalized_cifar10_forward.1} parent=1 // pred_region
      _
    $region25: #{normalized_cifar10_forward.1} parent=1 // pred_fallthru
      _
    %585 = vsyncpa [#allocation3], 1

</llo_original>
